<compile_context>
chip_gen: v6e
topology: v6e:2x2x1
jax: 0.10.0
libtpu: 0.0.40
codegen_flags: <defaults>
</compile_context>

<pallas_src>
import jax
import jax.numpy as jnp
from jax.experimental import pallas as pl
from jax.experimental.pallas import tpu as pltpu

LANE = 128
ROW_ALIGN = 16        # multiple of 8 (f32 sublanes) and 16 (bf16 sublane packing)
MAX_TILE_ROWS = 8192  # 8192 * 128 * 4B = 4 MiB per f32 block


def _mish_kernel(x_ref, o_ref):
    x = x_ref[...].astype(jnp.float32)
    # mish(x) = x * tanh(softplus(x)).  With u = e^x (exact identity):
    #   tanh(log1p(u)) = u*(u+2) / (u*(u+2) + 2)
    # Clamp before exp: for x >= 20 the f32 result is exactly x, and the clamp
    # keeps u*(u+2) finite (otherwise inf/inf -> NaN for large x and for the
    # uninitialized rows of a masked partial last block).
    u = jnp.exp(jnp.minimum(x, 20.0))
    num = u * (u + 2.0)
    # Exact division (instead of approximate reciprocal): f32-faithful and the
    # extra VALU/EUP work is fully hidden under the HBM roofline.
    y = x * (num / (num + 2.0))
    o_ref[...] = y.astype(o_ref.dtype)


def _mish_jnp(x):
    # pure-JAX reference
    return x * jnp.tanh(jax.nn.softplus(x))


def mish(x: jax.Array) -> jax.Array:
    """Elementwise Mish via a Pallas TPU kernel. Accepts any shape/float dtype."""
    orig_shape = x.shape
    orig_dtype = x.dtype
    n = x.size
    if n == 0:
        return x

    flat = x.reshape(-1)                      # bitcast (contiguous), no copy
    pad = (-n) % LANE                         # ragged remainder padding (< 128)
    if pad:
        flat = jnp.pad(flat, (0, pad))        # only non-128-multiple sizes pay this
    rows = flat.size // LANE
    x2d = flat.reshape(rows, LANE)            # bitcast; copy-free fast path if pad == 0

    # Block: at most 4 MiB; shrink (rounded to sublane alignment) for small inputs.
    tile_rows = min(MAX_TILE_ROWS, -(-rows // ROW_ALIGN) * ROW_ALIGN)
    grid = (pl.cdiv(rows, tile_rows),)        # partial last block masked by Pallas

    out2d = pl.pallas_call(
        _mish_kernel,
        out_shape=jax.ShapeDtypeStruct((rows, LANE), orig_dtype),
        grid_spec=pl.GridSpec(
            grid=grid,
            in_specs=[pl.BlockSpec((tile_rows, LANE), lambda i: (i, 0))],
            out_specs=pl.BlockSpec((tile_rows, LANE), lambda i: (i, 0)),
        ),
        compiler_params=pltpu.CompilerParams(
            dimension_semantics=("parallel",),
            # 16 MiB double-buffered pipeline + headroom; needed on v5e (16 MiB
            # default scoped VMEM), safe on v6e (128 MiB) and v7x (64 MiB).
            vmem_limit_bytes=32 << 20,
        ),
    )(x2d)

    out = out2d.reshape(-1)
    if pad:
        out = out[:n]
    return out.reshape(orig_shape)


if __name__ == "__main__":
    key = jax.random.PRNGKey(0)

    # NCHW input consistent with the module's usage inside PnP-3D conv blocks.
    x = jax.random.normal(key, (2, 4, 16, 16), dtype=jnp.float32)
    y = mish(x)
    jax.block_until_ready(y)

    y_ref = _mish_jnp(x)
    assert y.shape == x.shape and y.dtype == x.dtype
    assert jnp.allclose(y, y_ref, atol=1e-5, rtol=1e-5), "Mish kernel mismatch"

    # Ragged size: exercises the <128-element pad + masked partial row-block path.
    x2 = jax.random.normal(jax.random.PRNGKey(1), (3, 5, 7, 11), dtype=jnp.float32)
    y2 = mish(x2)
    jax.block_until_ready(y2)
    assert y2.shape == x2.shape and y2.dtype == x2.dtype
    assert jnp.allclose(y2, _mish_jnp(x2), atol=1e-5, rtol=1e-5), "ragged mismatch"

    print("KERNEL_OK")
</pallas_src>

<mosaic_0001>
module attributes {stable_mosaic.version = 11 : i64} {
  func.func @_mish_kernel(%arg0: i32, %arg1: memref<16x128xf32, #tpu.memory_space<vmem>>, %arg2: memref<16x128xf32, #tpu.memory_space<vmem>>) attributes {dimension_semantics = [#tpu.dimension_semantics<parallel>], iteration_bounds = array<i64: 1>, scalar_prefetch = 0 : i64, scratch_operands = 0 : i64, tpu.core_type = #tpu.core_type<tc>, window_params = [{transform_indices = @transform_0, window_bounds = array<i64: 16, 128>}, {transform_indices = @transform_1, window_bounds = array<i64: 16, 128>}]} {
    %c0 = arith.constant 0 : index
    %c0_0 = arith.constant 0 : index
    %0 = vector.load %arg1[%c0, %c0_0] : memref<16x128xf32, #tpu.memory_space<vmem>>, vector<16x128xf32>
    %cst = arith.constant 2.000000e+01 : f32
    %1 = vector.broadcast %cst : f32 to vector<16x128xf32>
    %2 = arith.minimumf %0, %1 : vector<16x128xf32>
    %3 = math.exp %2 : vector<16x128xf32>
    %cst_1 = arith.constant 2.000000e+00 : f32
    %4 = vector.broadcast %cst_1 : f32 to vector<16x128xf32>
    %5 = arith.addf %3, %4 : vector<16x128xf32>
    %6 = arith.mulf %3, %5 : vector<16x128xf32>
    %cst_2 = arith.constant 2.000000e+00 : f32
    %7 = vector.broadcast %cst_2 : f32 to vector<16x128xf32>
    %8 = arith.addf %6, %7 : vector<16x128xf32>
    %9 = arith.divf %6, %8 : vector<16x128xf32>
    %10 = arith.mulf %0, %9 : vector<16x128xf32>
    %c0_3 = arith.constant 0 : index
    %c0_4 = arith.constant 0 : index
    %11 = vector.load %arg2[%c0_3, %c0_4] : memref<16x128xf32, #tpu.memory_space<vmem>>, vector<16x128xf32>
    tpu.vector_store %arg2[%c0_3, %c0_4], %10 {strides = array<i32>} : memref<16x128xf32, #tpu.memory_space<vmem>>, vector<16x128xf32>,
    return
  }
  func.func @transform_0(%arg0: i32) -> (i32, i32) {
    %c0_i32 = arith.constant 0 : i32
    %c0_i32_0 = arith.constant 0 : i32
    return %arg0, %c0_i32 : i32, i32
  }
  func.func @transform_1(%arg0: i32) -> (i32, i32) {
    %c0_i32 = arith.constant 0 : i32
    %c0_i32_0 = arith.constant 0 : i32
    return %arg0, %c0_i32 : i32, i32
  }
}

</mosaic_0001>

<llo_original>
// kernel: tpu_custom_call.1
$region0: #{tpu_custom_call.1}
  #allocation0 [shape = 'u32[]', space=smem, size = 0x4, offset = 0x4, fixed_abs, tag = 'smem constant byte address 0x4 - core index']
  #allocation1 [shape = 'u32[144,128]{1,0:T(1,128)}', space=vmem, size = 0x12000, scoped, tag = 'internal scratch']
  %s0 = inlined_call_operand.hbm [shape: f32[16,128], index: 0, kind: input, shape index: {}]
  %s1 = inlined_call_operand.hbm [shape: f32[16,128], index: 1, kind: output, shape index: {}]
  %s2 = sld [smem:[#allocation0]]
  $region18: #{tpu_custom_call.1} parent=0
    _
  %s4 = ssub.s32 1, %s2
  %s5 = scalar_select 0, %s4, %s2
  $region1: #{tpu_custom_call.1} parent=0
    #allocation2 [shape = 'u8[8192]{0}', space=vmem, size = 0x2000, scoped, tag = 'input window, operand 0, single buffered']
    #allocation3 [shape = 's32[1]{0}', space=sflag, size = 0x4, scoped, tag = 'scoped memory for tpu_custom_call.1']
    #allocation4 [shape = 's32[1]{0}', space=sflag, size = 0x4, scoped, tag = 'scoped memory for tpu_custom_call.1']
    #allocation5 [shape = 'u8[8192]{0}', space=vmem, size = 0x2000, scoped, tag = 'output window, operand 0, single buffered']
    %6 = vsyncpa [#allocation3], 0
    %7 = vsyncpa [#allocation4], 0
    // Predicated region
    $region2: #{tpu_custom_call.1} parent=1 // pred_check
      _
    $region3: #{tpu_custom_call.1} parent=1 // pred_check_branch
      %9 = sbr.rel (0) target = $region5
    $region4: #{tpu_custom_call.1} parent=1 // pred_region
      %s11 = ssub.s32 256, 256
      %12 = vsyncadd [#allocation3], %s11
      %s13 = sshll.u32 [#allocation2], 4
      %s14 = int_to_ptr.vmem [resolvable:$true] %s13
      %19 = dma.hbm_to_vmem [thread:$0]  %s0, 256, %s14, [#allocation3], 128, 128, 8
    $region5: #{tpu_custom_call.1} parent=1 // pred_fallthru
      _
    // Predicated region
    $region6: #{tpu_custom_call.1} parent=1 // pred_check
      _
    $region7: #{tpu_custom_call.1} parent=1 // pred_check_branch
      %21 = sbr.rel (0) target = $region9
    $region8: #{tpu_custom_call.1} parent=1 // pred_region
      %22 = dma.done [#allocation3], 256
    $region9: #{tpu_custom_call.1} parent=1 // pred_fallthru
      _
    %v23 = vld [vmem:[#allocation2] sm:$0xff]
    %v24 = vld [vmem:[#allocation2 + $0x8] sm:$0xff]
    %v25 = vmin.f32 %v23, 20.0
    %v26 = vmin.f32 %v24, 20.0
    %v27 = vmul.f32 %v25, 1.442695
    %v28 = vpow.pop %v27
    %v29 = vmul.f32 %v26, 1.442695
    %v30 = vpow.pop %v29
    %v31 = vadd.f32 %v28, 2.0
    %v32 = vadd.f32 %v30, 2.0
    %v33 = vmul.f32 %v28, %v31
    %v34 = vmul.f32 %v30, %v32
    %v35 = vadd.f32 %v33, 2.0
    %v36 = vadd.f32 %v34, 2.0
    %v37 = vrcp.pop %v35
    %v38 = vmul.f32 %v33, %v37
    %v39 = vrcp.pop %v36
    %v40 = vmul.f32 %v34, %v39
    %v41 = vmul.f32 %v23, %v38
    %v42 = vmul.f32 %v24, %v40
    %43 = vst [vmem:[#allocation5] sm:$0xff] %v41
    %44 = vst [vmem:[#allocation5 + $0x8] sm:$0xff] %v42
    // Predicated region
    $region10: #{tpu_custom_call.1} parent=1 // pred_check
      _
    $region11: #{tpu_custom_call.1} parent=1 // pred_check_branch
      %46 = sbr.rel (0) target = $region13
    $region12: #{tpu_custom_call.1} parent=1 // pred_region
      %s48 = ssub.s32 256, 256
      %49 = vsyncadd [#allocation4], %s48
      %s50 = sshll.u32 [#allocation5], 4
      %s51 = int_to_ptr.vmem [resolvable:$true] %s50
      %56 = dma.vmem_to_hbm [thread:$0]  %s51, 256, %s1, [#allocation4], 128, 128, 8
    $region13: #{tpu_custom_call.1} parent=1 // pred_fallthru
      _
    // Predicated region
    $region14: #{tpu_custom_call.1} parent=1 // pred_check
      _
    $region15: #{tpu_custom_call.1} parent=1 // pred_check_branch
      %58 = sbr.rel (0) target = $region17
    $region16: #{tpu_custom_call.1} parent=1 // pred_region
      %59 = dma.done [#allocation4], 256
    $region17: #{tpu_custom_call.1} parent=1 // pred_fallthru
      _
    %60 = vsyncpa [#allocation3], 1
    %61 = vsyncpa [#allocation4], 1

</llo_original>
